<compile_context>
chip_gen: v5e
topology: v5e:2x2
jax: 0.10.0
libtpu: 0.0.40
codegen_flags: <defaults>
</compile_context>

<pallas_src>
import functools

import jax
import jax.numpy as jnp
from jax.experimental import pallas as pl
from jax.experimental.pallas import tpu as pltpu


def se_kernel(x_ref, wbig_t_ref, wf_t_ref, o_ref, *, inv_hw):
    # x_ref:      (Bt, C, HWp)  batch tile (spatial zero-padded to HWp lanes)
    # wbig_t_ref: (C, 4*C//r)   stacked branch weights, pre-transposed
    # wf_t_ref:   (4*C//r, C)   final fc weight, pre-transposed
    x = x_ref[...]                                        # (Bt, C, HWp)

    # Global average pool over spatial.  Padded lanes are zero, so the sum is
    # unaffected; divide by the *true* HW.
    y = jnp.sum(x, axis=-1) * inv_hw                      # (Bt, C)

    # Four fc branches fused into one matmul + ReLU.  With Bt rows per step
    # the MXU push/pop latency is amortized across the whole batch tile and
    # hides under the x DMA (the FC math is noise in this mem-bound kernel).
    ycat = jnp.maximum(
        jnp.dot(y, wbig_t_ref[...], preferred_element_type=jnp.float32), 0.0
    )                                                     # (Bt, 4*C//r)

    # Final fc + sigmoid.  Exact sigmoid keeps bit-level parity with the
    # reference at 1e-5 tolerance; pl.reciprocal(..., approx=True) would
    # route the divide to the idle EUP slot, but at O(Bt*C) elements this is
    # nowhere near the critical path, so exactness wins.
    logits = jnp.dot(ycat, wf_t_ref[...], preferred_element_type=jnp.float32)
    s = 1.0 / (1.0 + jnp.exp(-logits))                    # (Bt, C)

    # Scale the input (lane-broadcast of s over the padded spatial axis).
    o_ref[...] = x * s[:, :, None]


def se_layer_v2(x_nchw, w1, w2, w3, w4, wf, *, target_block_bytes=4 << 20):
    """x_nchw: (B, C, H, W) float32.
    w1..w4: (C//r, C)  PyTorch Linear weight layout (out, in), bias=False.
    wf:     (C, 4*C//r)
    """
    B, C, H, W = x_nchw.shape
    HW = H * W
    # Lane-dense last dim: pad HW up to a multiple of 128 (unmasked vst).
    HWp = ((HW + 127) // 128) * 128

    # Glue: fold the 4 branches into one weight, pre-transpose for y @ W^T.
    wbig_t = jnp.concatenate([w1, w2, w3, w4], axis=0).T.astype(jnp.float32)  # (C, 4*C//r)
    wf_t = wf.T.astype(jnp.float32)                                           # (4*C//r, C)
    CR4 = wbig_t.shape[1]

    # Batch tile: aim for ~4 MiB x-blocks (amortizes per-step pipeline
    # overhead, ~85% of HBM roofline per the tile-size sweep), but keep the
    # grid length >= 2 so both v7x TensorCores get work.
    bytes_per_batch_row = C * HWp * 4
    Bt = max(1, min(B, target_block_bytes // bytes_per_batch_row))
    if B >= 2:
        Bt = min(Bt, -(-B // 2))           # ceil(B/2)  =>  grid length >= 2
    Bp = -(-B // Bt) * Bt                  # pad batch up to a multiple of Bt
    grid = Bp // Bt

    x = x_nchw.reshape(B, C, HW).astype(jnp.float32)
    if Bp != B or HWp != HW:
        x = jnp.pad(x, ((0, Bp - B), (0, 0), (0, HWp - HW)))
    # TODO(synk): for a bf16 model, DMA x in bf16 and upcast only inside the
    # pool accumulation to halve HBM traffic (v6e/v7x); kept f32 here for
    # exact parity with the f32 reference.

    # Explicit VMEM budget: double-buffered in + out blocks + weights +
    # headroom, so the default scoped limit (16 MiB v5e / 32 MiB v6e,v7x)
    # never silently constrains the pipeline; capped well under the 64 MiB
    # physical VMEM of a v7x TensorCore.
    block_bytes = Bt * C * HWp * 4
    weight_bytes = 2 * C * CR4 * 4
    vmem_needed = 4 * block_bytes + 2 * weight_bytes + (2 << 20)
    vmem_limit = int(min(max(vmem_needed, 16 << 20), 48 << 20))

    cost = pl.CostEstimate(
        flops=2 * B * C * HW + 4 * B * C * CR4,
        transcendentals=B * C,
        bytes_accessed=2 * B * C * HW * 4 + 2 * weight_bytes,
    )

    out = pl.pallas_call(
        functools.partial(se_kernel, inv_hw=1.0 / HW),
        out_shape=jax.ShapeDtypeStruct((Bp, C, HWp), jnp.float32),
        grid_spec=pltpu.PrefetchScalarGridSpec(
            num_scalar_prefetch=0,
            grid=(grid,),
            in_specs=[
                pl.BlockSpec((Bt, C, HWp), lambda b: (b, 0, 0)),
                pl.BlockSpec((C, CR4), lambda b: (0, 0)),
                pl.BlockSpec((CR4, C), lambda b: (0, 0)),
            ],
            out_specs=pl.BlockSpec((Bt, C, HWp), lambda b: (b, 0, 0)),
        ),
        compiler_params=pltpu.CompilerParams(
            dimension_semantics=("parallel",),
            vmem_limit_bytes=vmem_limit,
        ),
        cost_estimate=cost,
    )(x, wbig_t, wf_t)

    return out[:B, :, :HW].reshape(B, C, H, W)


def se_layer_v2_ref(x, w1, w2, w3, w4, wf):
    """Pure-JAX reference mirroring the PyTorch forward."""
    y = jnp.mean(x, axis=(2, 3))                          # (B, C)
    y1 = jax.nn.relu(y @ w1.T)
    y2 = jax.nn.relu(y @ w2.T)
    y3 = jax.nn.relu(y @ w3.T)
    y4 = jax.nn.relu(y @ w4.T)
    ycat = jnp.concatenate([y1, y2, y3, y4], axis=1)      # (B, 4*C//r)
    s = jax.nn.sigmoid(ycat @ wf.T)                       # (B, C)
    return x * s[:, :, None, None]


if __name__ == "__main__":
    def make_case(key, B, C, H, W, reduction=8):
        hid = C // reduction
        kx, k1, k2, k3, k4, kf = jax.random.split(key, 6)
        x = jax.random.normal(kx, (B, C, H, W), dtype=jnp.float32)
        # deterministic synthetic weights (PyTorch Linear layout: (out, in))
        w1 = jax.random.normal(k1, (hid, C), dtype=jnp.float32) * 0.1
        w2 = jax.random.normal(k2, (hid, C), dtype=jnp.float32) * 0.1
        w3 = jax.random.normal(k3, (hid, C), dtype=jnp.float32) * 0.1
        w4 = jax.random.normal(k4, (hid, C), dtype=jnp.float32) * 0.1
        wf = jax.random.normal(kf, (C, hid * 4), dtype=jnp.float32) * 0.1
        return x, w1, w2, w3, w4, wf

    key = jax.random.PRNGKey(0)
    ka, kb = jax.random.split(key)

    # Case 1: HW = 256 (already lane-dense), batch 8 tiled as 2 steps of 4.
    args = make_case(ka, B=8, C=16, H=16, W=16)
    out = jax.block_until_ready(se_layer_v2(*args))
    ref = se_layer_v2_ref(*args)
    assert out.shape == ref.shape
    assert jnp.allclose(out, ref, atol=1e-5, rtol=1e-5), "case1 mismatch vs reference"

    # Case 2: HW = 196 -> padded to 256 lanes; odd batch exercises batch pad.
    args = make_case(kb, B=3, C=16, H=14, W=14)
    out = jax.block_until_ready(se_layer_v2(*args))
    ref = se_layer_v2_ref(*args)
    assert out.shape == ref.shape
    assert jnp.allclose(out, ref, atol=1e-5, rtol=1e-5), "case2 mismatch vs reference"

    print("KERNEL_OK")
</pallas_src>

<mosaic_0001>
module attributes {stable_mosaic.version = 11 : i64} {
  func.func @se_kernel(%arg0: i32, %arg1: memref<4x16x256xf32, #tpu.memory_space<vmem>>, %arg2: memref<16x8xf32, #tpu.memory_space<vmem>>, %arg3: memref<8x16xf32, #tpu.memory_space<vmem>>, %arg4: memref<4x16x256xf32, #tpu.memory_space<vmem>>) attributes {dimension_semantics = [#tpu.dimension_semantics<parallel>], iteration_bounds = array<i64: 2>, scalar_prefetch = 0 : i64, scratch_operands = 0 : i64, tpu.core_type = #tpu.core_type<tc>, window_params = [{transform_indices = @transform_0, window_bounds = array<i64: 4, 16, 256>}, {pipeline_mode = #tpu.pipeline_mode<synchronous>, transform_indices = @transform_1, window_bounds = array<i64: 16, 8>}, {pipeline_mode = #tpu.pipeline_mode<synchronous>, transform_indices = @transform_2, window_bounds = array<i64: 8, 16>}, {transform_indices = @transform_3, window_bounds = array<i64: 4, 16, 256>}]} {
    %c0 = arith.constant 0 : index
    %c0_0 = arith.constant 0 : index
    %c0_1 = arith.constant 0 : index
    %0 = vector.load %arg1[%c0, %c0_0, %c0_1] : memref<4x16x256xf32, #tpu.memory_space<vmem>>, vector<4x16x256xf32>
    %cst = arith.constant dense<0.000000e+00> : vector<4x16xf32>
    %1 = vector.multi_reduction <add>, %0, %cst [2] : vector<4x16x256xf32> to vector<4x16xf32>
    %cst_2 = arith.constant 3.906250e-03 : f32
    %2 = vector.broadcast %cst_2 : f32 to vector<4x16xf32>
    %3 = arith.mulf %1, %2 : vector<4x16xf32>
    %c0_3 = arith.constant 0 : index
    %c0_4 = arith.constant 0 : index
    %4 = vector.load %arg2[%c0_3, %c0_4] : memref<16x8xf32, #tpu.memory_space<vmem>>, vector<16x8xf32>
    %cst_5 = arith.constant dense<0.000000e+00> : vector<4x8xf32>
    %5 = tpu.matmul %3, %4, %cst_5 {dimension_numbers = #tpu.dot_dimension_numbers<[1], [0], [0], [1], [0, 0, 1, 1], [], []>} : vector<4x16xf32>, vector<16x8xf32>, vector<4x8xf32> -> vector<4x8xf32>
    %cst_6 = arith.constant 0.000000e+00 : f32
    %6 = vector.broadcast %cst_6 : f32 to vector<4x8xf32>
    %7 = arith.maximumf %5, %6 : vector<4x8xf32>
    %c0_7 = arith.constant 0 : index
    %c0_8 = arith.constant 0 : index
    %8 = vector.load %arg3[%c0_7, %c0_8] : memref<8x16xf32, #tpu.memory_space<vmem>>, vector<8x16xf32>
    %cst_9 = arith.constant dense<0.000000e+00> : vector<4x16xf32>
    %9 = tpu.matmul %7, %8, %cst_9 {dimension_numbers = #tpu.dot_dimension_numbers<[1], [0], [0], [1], [0, 0, 1, 1], [], []>} : vector<4x8xf32>, vector<8x16xf32>, vector<4x16xf32> -> vector<4x16xf32>
    %cst_10 = arith.constant 0.000000e+00 : f32
    %10 = vector.broadcast %cst_10 : f32 to vector<4x16xf32>
    %11 = arith.subf %10, %9 : vector<4x16xf32>
    %12 = math.exp %11 : vector<4x16xf32>
    %cst_11 = arith.constant 1.000000e+00 : f32
    %13 = vector.broadcast %cst_11 : f32 to vector<4x16xf32>
    %14 = arith.addf %13, %12 : vector<4x16xf32>
    %cst_12 = arith.constant 1.000000e+00 : f32
    %15 = vector.broadcast %cst_12 : f32 to vector<4x16xf32>
    %16 = arith.divf %15, %14 : vector<4x16xf32>
    %17 = vector.shape_cast %16 : vector<4x16xf32> to vector<4x16x1xf32>
    %18 = vector.broadcast %17 : vector<4x16x1xf32> to vector<4x16x256xf32>
    %19 = arith.mulf %0, %18 : vector<4x16x256xf32>
    %c0_13 = arith.constant 0 : index
    %c0_14 = arith.constant 0 : index
    %c0_15 = arith.constant 0 : index
    %20 = vector.load %arg4[%c0_13, %c0_14, %c0_15] : memref<4x16x256xf32, #tpu.memory_space<vmem>>, vector<4x16x256xf32>
    tpu.vector_store %arg4[%c0_13, %c0_14, %c0_15], %19 {strides = array<i32>} : memref<4x16x256xf32, #tpu.memory_space<vmem>>, vector<4x16x256xf32>,
    return
  }
  func.func @transform_0(%arg0: i32) -> (i32, i32, i32) {
    %c0_i32 = arith.constant 0 : i32
    %c0_i32_0 = arith.constant 0 : i32
    %c0_i32_1 = arith.constant 0 : i32
    return %arg0, %c0_i32, %c0_i32_0 : i32, i32, i32
  }
  func.func @transform_1(%arg0: i32) -> (i32, i32) {
    %c0_i32 = arith.constant 0 : i32
    %c0_i32_0 = arith.constant 0 : i32
    %c0_i32_1 = arith.constant 0 : i32
    return %c0_i32, %c0_i32_0 : i32, i32
  }
  func.func @transform_2(%arg0: i32) -> (i32, i32) {
    %c0_i32 = arith.constant 0 : i32
    %c0_i32_0 = arith.constant 0 : i32
    %c0_i32_1 = arith.constant 0 : i32
    return %c0_i32, %c0_i32_0 : i32, i32
  }
  func.func @transform_3(%arg0: i32) -> (i32, i32, i32) {
    %c0_i32 = arith.constant 0 : i32
    %c0_i32_0 = arith.constant 0 : i32
    %c0_i32_1 = arith.constant 0 : i32
    return %arg0, %c0_i32, %c0_i32_0 : i32, i32, i32
  }
}

</mosaic_0001>

<llo_original>
// kernel: tpu_custom_call.1
$region0: #{tpu_custom_call.1}
  #allocation0 [shape = 'u32[]', space=smem, size = 0x4, offset = 0x4, fixed_abs, tag = 'smem constant byte address 0x4 - core index']
  #allocation1 [shape = 'u32[72,128]{1,0:T(1,128)}', space=vmem, size = 0x9000, scoped, tag = 'internal scratch']
  %s0 = inlined_call_operand.hbm [shape: f32[8,16,256], index: 0, kind: input, shape index: {}]
  %s1 = inlined_call_operand.vmem [shape: f32[16,8], index: 1, kind: input, shape index: {}]
  %s2 = inlined_call_operand.vmem [shape: f32[8,16], index: 2, kind: input, shape index: {}]
  %s3 = inlined_call_operand.hbm [shape: f32[8,16,256], index: 3, kind: output, shape index: {}]
  %s4 = sld [smem:[#allocation0]]
  $region49: #{tpu_custom_call.1} parent=0
    _
  %s6 = ssub.s32 1, %s4
  %s7 = scalar_select 0, %s6, %s4
  $region1: #{tpu_custom_call.1} parent=0
    #allocation2 [shape = 'u8[131072]{0}', space=vmem, size = 0x20000, scoped, tag = 'input window, operand 0']
    #allocation3 [shape = 's32[2]{0}', space=sflag, size = 0x8, scoped, tag = 'scoped memory for tpu_custom_call.1']
    #allocation4 [shape = 's32[2]{0}', space=sflag, size = 0x8, scoped, tag = 'scoped memory for tpu_custom_call.1']
    #allocation5 [shape = 'u8[131072]{0}', space=vmem, size = 0x20000, scoped, tag = 'output window, operand 0']
    %8 = vsyncpa [#allocation3], 0
    %s9 = scalar_lea.sflag [#allocation3], 1
    %10 = vsyncpa %s9, 0
    %11 = vsyncpa [#allocation4], 0
    %s12 = scalar_lea.sflag [#allocation4], 1
    %13 = vsyncpa %s12, 0
    loop: start=0, step=1, limit=4
    $region2: #{tpu_custom_call.1} parent=1 // loop_pre_header
      _
    $region3: #{tpu_custom_call.1} parent=1 // loop_header
      %s15 = sphi 0, %s19
      %p16 = scmp.ge.s32.totalorder %s15, 4
      %s25 = sphi 0, %s27
      %s28 = sphi 0, %s25
      %s29 = sphi 0, %s28
      %s45 = sphi 0, %s29
      %s49 = sphi 0, %s49
      %s51 = sphi 0, %s49
      %s52 = sphi 0, %s51
      %s66 = sphi 0, %s52
      %s70 = sphi 0, %s70
      %s72 = sphi 0, %s70
      %s73 = sphi 0, %s72
      %s87 = sphi 0, %s73
      %s93 = sphi 0, %s95
      %s96 = sphi 0, %s93
      %s97 = sphi 0, %s96
      %s113 = sphi 0, %s97
    $region4: #{tpu_custom_call.1} parent=1 // loop_header_branch
      %18 = sbr.rel (%p16) target = $region8
    $region5: #{tpu_custom_call.1} parent=1 // loop_body
      %s20 = ssub.s32 %s15, 1
      %s21 = ssub.s32 %s15, 2
      %s22 = sadd.s32 %s15, 1
      %s23 = ssub.s32 %s15, %s22
      %p24 = scmp.eq.s32.totalorder %s23, 0
      %s26 = sadd.s32 %s25, 1
      %s27 = scalar_select %p24, %s25, %s26
      %p30 = pneg %p24
      %p31 = scmp.eq.s32.totalorder %s15, 1
      %p32 = por %p30, %p31
      %p33 = scmp.ne.s32.totalorder %s25, %s28
      %p34 = scmp.eq.s32.totalorder %s15, 0
      %p35 = por %p33, %p34
      %p36 = scmp.ne.s32.totalorder %s25, %s28
      %p37 = scmp.eq.s32.totalorder %s20, 1
      %p38 = por %p36, %p37
      %p39 = scmp.ne.s32.totalorder %s28, %s29
      %p40 = scmp.eq.s32.totalorder %s20, 0
      %p41 = por %p39, %p40
      %p42 = scmp.ne.s32.totalorder %s28, %s29
      %p43 = scmp.eq.s32.totalorder %s21, 1
      %p44 = por %p42, %p43
      %p46 = scmp.ne.s32.totalorder %s29, %s45
      %p47 = scmp.eq.s32.totalorder %s21, 0
      %p48 = por %p46, %p47
      %s50 = sadd.s32 %s49, 1
      %p53 = scmp.eq.s32.totalorder %s15, 1
      %p54 = scmp.ne.s32.totalorder %s49, %s51
      %p55 = scmp.eq.s32.totalorder %s15, 0
      %p56 = por %p54, %p55
      %p57 = scmp.ne.s32.totalorder %s49, %s51
      %p58 = scmp.eq.s32.totalorder %s20, 1
      %p59 = por %p57, %p58
      %p60 = scmp.ne.s32.totalorder %s51, %s52
      %p61 = scmp.eq.s32.totalorder %s20, 0
      %p62 = por %p60, %p61
      %p63 = scmp.ne.s32.totalorder %s51, %s52
      %p64 = scmp.eq.s32.totalorder %s21, 1
      %p65 = por %p63, %p64
      %p67 = scmp.ne.s32.totalorder %s52, %s66
      %p68 = scmp.eq.s32.totalorder %s21, 0
      %p69 = por %p67, %p68
      %s71 = sadd.s32 %s70, 1
      %p74 = scmp.eq.s32.totalorder %s15, 1
      %p75 = scmp.ne.s32.totalorder %s70, %s72
      %p76 = scmp.eq.s32.totalorder %s15, 0
      %p77 = por %p75, %p76
      %p78 = scmp.ne.s32.totalorder %s70, %s72
      %p79 = scmp.eq.s32.totalorder %s20, 1
      %p80 = por %p78, %p79
      %p81 = scmp.ne.s32.totalorder %s72, %s73
      %p82 = scmp.eq.s32.totalorder %s20, 0
      %p83 = por %p81, %p82
      %p84 = scmp.ne.s32.totalorder %s72, %s73
      %p85 = scmp.eq.s32.totalorder %s21, 1
      %p86 = por %p84, %p85
      %p88 = scmp.ne.s32.totalorder %s73, %s87
      %p89 = scmp.eq.s32.totalorder %s21, 0
      %p90 = por %p88, %p89
      %s91 = ssub.s32 %s15, %s22
      %p92 = scmp.eq.s32.totalorder %s91, 0
      %s94 = sadd.s32 %s93, 1
      %s95 = scalar_select %p92, %s93, %s94
      %p98 = pneg %p92
      %p99 = scmp.eq.s32.totalorder %s15, 1
      %p100 = por %p98, %p99
      %p101 = scmp.ne.s32.totalorder %s93, %s96
      %p102 = scmp.eq.s32.totalorder %s15, 0
      %p103 = por %p101, %p102
      %p104 = scmp.ne.s32.totalorder %s93, %s96
      %p105 = scmp.eq.s32.totalorder %s20, 1
      %p106 = por %p104, %p105
      %p107 = scmp.ne.s32.totalorder %s96, %s97
      %p108 = scmp.eq.s32.totalorder %s20, 0
      %p109 = por %p107, %p108
      %p110 = scmp.ne.s32.totalorder %s96, %s97
      %p111 = scmp.eq.s32.totalorder %s21, 1
      %p112 = por %p110, %p111
      %p114 = scmp.ne.s32.totalorder %s97, %s113
      %p115 = scmp.eq.s32.totalorder %s21, 0
      %p116 = por %p114, %p115
      %p117 = scmp.le.s32.totalorder 1, %s15
      %p118 = scmp.lt.s32.totalorder %s15, 3
      %p119 = pnand %p117, %p118
      %p120 = pneg %p119
      // Predicated region
      $region9: #{tpu_custom_call.1} parent=5 // pred_check
        _
      $region10: #{tpu_custom_call.1} parent=5 // pred_check_branch
        %122 = sbr.rel (%p119) target = $region12
      $region11: #{tpu_custom_call.1} parent=5 // pred_region
        %s123 = ssub.s32 %s15, 1
        // Predicated region
        $region13: #{tpu_custom_call.1} parent=11 // pred_check
          %p124 = pneg %p62
        $region14: #{tpu_custom_call.1} parent=11 // pred_check_branch
          %126 = sbr.rel (%p124) target = $region16
        $region15: #{tpu_custom_call.1} parent=11 // pred_region
          _
        $region16: #{tpu_custom_call.1} parent=11 // pred_fallthru
          _
        // Predicated region
        $region17: #{tpu_custom_call.1} parent=11 // pred_check
          %p127 = pneg %p83
        $region18: #{tpu_custom_call.1} parent=11 // pred_check_branch
          %129 = sbr.rel (%p127) target = $region20
        $region19: #{tpu_custom_call.1} parent=11 // pred_region
          _
        $region20: #{tpu_custom_call.1} parent=11 // pred_fallthru
          _
      $region12: #{tpu_custom_call.1} parent=5 // pred_fallthru
        _
      %p130 = scmp.lt.s32.totalorder %s15, 2
      // Predicated region
      $region21: #{tpu_custom_call.1} parent=5 // pred_check
        %p131 = pneg %p130
      $region22: #{tpu_custom_call.1} parent=5 // pred_check_branch
        %133 = sbr.rel (%p131) target = $region24
      $region23: #{tpu_custom_call.1} parent=5 // pred_region
        // Predicated region
        $region25: #{tpu_custom_call.1} parent=23 // pred_check
          %p134 = pneg %p35
        $region26: #{tpu_custom_call.1} parent=23 // pred_check_branch
          %136 = sbr.rel (%p134) target = $region28
        $region27: #{tpu_custom_call.1} parent=23 // pred_region
          %s137 = sand.u32 %s25, 1
          %s138 = scalar_lea.sflag [#allocation3], %s137
          %s139 = sand.u32 %s25, 1
          %s140 = smul.addr %s139, 128
          %s141 = scalar_lea.vmem [#allocation2], %s140
          %s142 = smul.u32 4, %s15
          %144 = vsyncadd %s138, 0
          %s145 = smul.addr %s142, 4
          %s146 = smul.addr %s145, 8
          %s147 = scalar_lea.hbm %s0, %s146
          %s148 = sshll.u32 %s147, 4
          %s149 = int_to_ptr.hbm [resolvable:$true] %s148
          %s150 = sshll.u32 %s141, 4
          %s151 = int_to_ptr.vmem [resolvable:$true] %s150
          %156 = dma.hbm_to_vmem [thread:$0]  %s149, 2048, %s151, %s138, 256, 256, 16
        $region28: #{tpu_custom_call.1} parent=23 // pred_fallthru
          _
      $region24: #{tpu_custom_call.1} parent=5 // pred_fallthru
        _
      %p157 = scmp.le.s32.totalorder 1, %s15
      %p158 = scmp.lt.s32.totalorder %s15, 3
      %p159 = pnand %p157, %p158
      %p160 = pneg %p159
      // Predicated region
      $region29: #{tpu_custom_call.1} parent=5 // pred_check
        _
      $region30: #{tpu_custom_call.1} parent=5 // pred_check_branch
        %162 = sbr.rel (%p159) target = $region32
      $region31: #{tpu_custom_call.1} parent=5 // pred_region
        %s163 = ssub.s32 %s15, 1
        %s164 = sand.u32 %s28, 1
        %s165 = scalar_lea.sflag [#allocation3], %s164
        %s166 = sand.u32 %s28, 1
        %s167 = smul.addr %s166, 128
        %s168 = scalar_lea.vmem [#allocation2], %s167
        // Predicated region
        $region33: #{tpu_custom_call.1} parent=31 // pred_check
          %p169 = pneg %p41
        $region34: #{tpu_custom_call.1} parent=31 // pred_check_branch
          %171 = sbr.rel (%p169) target = $region36
        $region35: #{tpu_custom_call.1} parent=31 // pred_region
          %173 = dma.done %s165, 2048
        $region36: #{tpu_custom_call.1} parent=31 // pred_fallthru
          _
        %s174 = sand.u32 %s28, 1
        %s175 = scalar_lea.sflag [#allocation3], %s174
        %s176 = sand.u32 %s28, 1
        %s177 = smul.addr %s176, 128
        %s178 = scalar_lea.vmem [#allocation2], %s177
        %p179 = pneg %p41
        %p180 = pneg %p38
        %p181 = pneg %p62
        %p182 = pneg %p59
        %p183 = pneg %p83
        %p184 = pneg %p80
        %p185 = pneg %p109
        %p186 = pneg %p106
        %s187 = sand.u32 %s96, 1
        %s188 = scalar_lea.sflag [#allocation4], %s187
        %s189 = sand.u32 %s96, 1
        %s190 = smul.addr %s189, 128
        %s191 = scalar_lea.vmem [#allocation5], %s190
        %s192 = smul.u32 4, %s20
        %s193 = smul.u32 4, %s20
        %v194 = vld [vmem:[%s168] sm:$0xff]
        %v195 = vld [vmem:[%s168 + $0x8] sm:$0xff]
        %v196 = vld [vmem:[%s168 + $0x10] sm:$0xff]
        %v197 = vld [vmem:[%s168 + $0x18] sm:$0xff]
        %v198 = vld [vmem:[%s168 + $0x20] sm:$0xff]
        %v199 = vld [vmem:[%s168 + $0x28] sm:$0xff]
        %v200 = vld [vmem:[%s168 + $0x30] sm:$0xff]
        %v201 = vld [vmem:[%s168 + $0x38] sm:$0xff]
        %v202 = vld [vmem:[%s168 + $0x40] sm:$0xff]
        %v203 = vld [vmem:[%s168 + $0x48] sm:$0xff]
        %v204 = vld [vmem:[%s168 + $0x50] sm:$0xff]
        %v205 = vld [vmem:[%s168 + $0x58] sm:$0xff]
        %v206 = vld [vmem:[%s168 + $0x60] sm:$0xff]
        %v207 = vld [vmem:[%s168 + $0x68] sm:$0xff]
        %v208 = vld [vmem:[%s168 + $0x70] sm:$0xff]
        %v209 = vld [vmem:[%s168 + $0x78] sm:$0xff]
        %v210 = vadd.f32 %v194, %v195
        %211 = vadd.xlane.f32.xlu0 %v210
        %v212 = vpop.xlane.xlu0 %211
        %v213 = vadd.f32 %v196, %v197
        %214 = vadd.xlane.f32.xlu0 %v213
        %v215 = vpop.xlane.xlu0 %214
        %v216 = vadd.f32 %v198, %v199
        %217 = vadd.xlane.f32.xlu0 %v216
        %v218 = vpop.xlane.xlu0 %217
        %v219 = vadd.f32 %v200, %v201
        %220 = vadd.xlane.f32.xlu0 %v219
        %v221 = vpop.xlane.xlu0 %220
        %v222 = vadd.f32 %v202, %v203
        %223 = vadd.xlane.f32.xlu0 %v222
        %v224 = vpop.xlane.xlu0 %223
        %v225 = vadd.f32 %v204, %v205
        %226 = vadd.xlane.f32.xlu0 %v225
        %v227 = vpop.xlane.xlu0 %226
        %v228 = vadd.f32 %v206, %v207
        %229 = vadd.xlane.f32.xlu0 %v228
        %v230 = vpop.xlane.xlu0 %229
        %v231 = vadd.f32 %v208, %v209
        %232 = vadd.xlane.f32.xlu0 %v231
        %v233 = vpop.xlane.xlu0 %232
        %v234 = vmul.f32 %v212, 0.00390625
        %v235 = vmul.f32 %v215, 0.00390625
        %v236 = vmul.f32 %v218, 0.00390625
        %v237 = vmul.f32 %v221, 0.00390625
        %v238 = vmul.f32 %v224, 0.00390625
        %v239 = vmul.f32 %v227, 0.00390625
        %v240 = vmul.f32 %v230, 0.00390625
        %v241 = vmul.f32 %v233, 0.00390625
        %v242 = vld [vmem:[%s1] sm:$0xff]
        %v243 = vld [vmem:[%s1 + $0x8] sm:$0xff]
        %v252 = vlaneseq
        %v253 = vand.u32 %v252, 127
        %v254 = vperm.slane %v234, %v253
        %v255 = vadd.s32 %v253, 4294967288
        %v256 = vperm.slane %v235, %v255
        %vm257 = vcmask 130112
        %v258 = vsel %vm257, %v256, %v254
        %v259 = vperm.slane %v236, %v253
        %v260 = vperm.slane %v237, %v255
        %v261 = vsel %vm257, %v260, %v259
        %v262 = vperm.slane %v238, %v253
        %v263 = vperm.slane %v239, %v255
        %v264 = vsel %vm257, %v263, %v262
        %v265 = vperm.slane %v240, %v253
        %v266 = vperm.slane %v241, %v255
        %v267 = vsel %vm257, %v266, %v265
        %vm268 = vcmask 1041409
        %v269 = vsel %vm268, %v261, %v258
        %vm270 = vcmask 1042434
        %v271 = vsel %vm270, %v264, %v269
        %vm272 = vcmask 1043459
        %v273 = vsel %vm272, %v267, %v271
        %vm274 = vcmask 130048
        %v275 = vsel %vm274, %v273, 0
        %277 = vmatpush.msra.mxu0 0.0
        %278 = vmatpush.msra.mxu0 0.0
        %279 = vmatpush.msra.mxu0 0.0
        %280 = vmatpush.msra.mxu0 0.0
        %281 = vmatpush.msra.mxu0 0.0
        %282 = vmatpush.msra.mxu0 0.0
        %283 = vmatpush.msra.mxu0 0.0
        %284 = vmatpush.msra.mxu0 0.0
        %285 = vmatpush.msra.mxu0 0.0
        %286 = vmatpush.msra.mxu0 0.0
        %287 = vmatpush.msra.mxu0 0.0
        %288 = vmatpush.msra.mxu0 0.0
        %289 = vmatpush.msra.mxu0 0.0
        %290 = vmatpush.msra.mxu0 0.0
        %291 = vmatpush.msra.mxu0 %v243
        %292 = vmatpush.msra.mxu0 %v242
        %293 = vmatmul.f32.gmra.mxu0 %v275
        %v294 = vpop.f32.mrf.mxu0
        %v295 = vadd.f32 0.0, %v294
        %296 = vdwg.mxu0
        %v297 = vmax.f32 %v295, 0.0
        %v298 = vld [vmem:[%s2] sm:$0xff]
        %vm299 = vcmask 64512
        %v301 = vsel %vm299, %v297, 0
        %303 = vmatpush.msra.mxu0 0.0
        %304 = vmatpush.msra.mxu0 0.0
        %305 = vmatpush.msra.mxu0 0.0
        %306 = vmatpush.msra.mxu0 0.0
        %307 = vmatpush.msra.mxu0 0.0
        %308 = vmatpush.msra.mxu0 0.0
        %309 = vmatpush.msra.mxu0 0.0
        %310 = vmatpush.msra.mxu0 0.0
        %311 = vmatpush.msra.mxu0 0.0
        %312 = vmatpush.msra.mxu0 0.0
        %313 = vmatpush.msra.mxu0 0.0
        %314 = vmatpush.msra.mxu0 0.0
        %315 = vmatpush.msra.mxu0 0.0
        %316 = vmatpush.msra.mxu0 0.0
        %317 = vmatpush.msra.mxu0 0.0
        %318 = vmatpush.msra.mxu0 %v298
        %319 = vmatmul.f32.gmra.mxu0 %v301
        %v320 = vpop.f32.mrf.mxu0
        %v321 = vadd.f32 0.0, %v320
        %322 = vdwg.mxu0
        %v323 = vsub.f32 0.0, %v321
        %v324 = vmul.f32 %v323, 1.442695
        %v325 = vpow.pop %v324
        %v326 = vadd.f32 %v325, 1.0
        %v327 = vrcp.pop %v326
        %v328 = vmul.f32 %v326, %v327
        %v329 = vsub.f32 1.0, %v328
        %v330 = vmul.f32 %v327, %v329
        %v331 = vadd.f32 %v327, %v330
        %vm332 = vweird.f32 %v326
        %vm333 = vweird.f32 %v327
        %vm334 = vmor %vm332, %vm333
        %v335 = vsel %vm334, %v327, %v331
        %v336 = vand.u32 2147483647, %v326
        %vm337 = vcmp.eq.f32.partialorder %v336, 8.507059e+37
        %v338 = vand.u32 %v326, 2147483648
        %v339 = vor.u32 1.1754944e-38, %v338
        %v340 = vsel %vm337, %v339, %v335
        %v341 = vmul.f32 1.0, %v340
        %v342 = vperm.slane %v341, 0
        %v343 = vlaneseq
        %v344 = vshrl.u32 %v343, 7
        %346 = vset.pattern.permute.xlu0 %v344
        %347 = vperm.xlu0 %346, %v342
        %v348 = vpop.permute.xlu0 %347
        %v349 = vlaneseq
        %v350 = vshrl.u32 %v349, 7
        %v351 = vadd.s32 %v350, 8
        %352 = vset.pattern.permute.xlu0 %v351
        %353 = vperm.xlu0 %352, %v342
        %v354 = vpop.permute.xlu0 %353
        %v355 = vperm.slane %v341, 1
        %v356 = vlaneseq
        %v357 = vshrl.u32 %v356, 7
        %359 = vset.pattern.permute.xlu0 %v357
        %360 = vperm.xlu0 %359, %v355
        %v361 = vpop.permute.xlu0 %360
        %v362 = vlaneseq
        %v363 = vshrl.u32 %v362, 7
        %v364 = vadd.s32 %v363, 8
        %365 = vset.pattern.permute.xlu0 %v364
        %366 = vperm.xlu0 %365, %v355
        %v367 = vpop.permute.xlu0 %366
        %v368 = vperm.slane %v341, 2
        %v369 = vlaneseq
        %v370 = vshrl.u32 %v369, 7
        %372 = vset.pattern.permute.xlu0 %v370
        %373 = vperm.xlu0 %372, %v368
        %v374 = vpop.permute.xlu0 %373
        %v375 = vlaneseq
        %v376 = vshrl.u32 %v375, 7
        %v377 = vadd.s32 %v376, 8
        %378 = vset.pattern.permute.xlu0 %v377
        %379 = vperm.xlu0 %378, %v368
        %v380 = vpop.permute.xlu0 %379
        %v381 = vperm.slane %v341, 3
        %v382 = vlaneseq
        %v383 = vshrl.u32 %v382, 7
        %385 = vset.pattern.permute.xlu0 %v383
        %386 = vperm.xlu0 %385, %v381
        %v387 = vpop.permute.xlu0 %386
        %v388 = vlaneseq
        %v389 = vshrl.u32 %v388, 7
        %v390 = vadd.s32 %v389, 8
        %391 = vset.pattern.permute.xlu0 %v390
        %392 = vperm.xlu0 %391, %v381
        %v393 = vpop.permute.xlu0 %392
        %v394 = vmul.f32 %v194, %v348
        %v395 = vmul.f32 %v195, %v348
        %v396 = vmul.f32 %v196, %v354
        %v397 = vmul.f32 %v197, %v354
        %v398 = vmul.f32 %v198, %v361
        %v399 = vmul.f32 %v199, %v361
        %v400 = vmul.f32 %v200, %v367
        %v401 = vmul.f32 %v201, %v367
        %v402 = vmul.f32 %v202, %v374
        %v403 = vmul.f32 %v203, %v374
        %v404 = vmul.f32 %v204, %v380
        %v405 = vmul.f32 %v205, %v380
        %v406 = vmul.f32 %v206, %v387
        %v407 = vmul.f32 %v207, %v387
        %v408 = vmul.f32 %v208, %v393
        %v409 = vmul.f32 %v209, %v393
        %410 = vst [vmem:[%s191] sm:$0xff] %v394
        %411 = vst [vmem:[%s191 + $0x8] sm:$0xff] %v395
        %412 = vst [vmem:[%s191 + $0x10] sm:$0xff] %v396
        %413 = vst [vmem:[%s191 + $0x18] sm:$0xff] %v397
        %414 = vst [vmem:[%s191 + $0x20] sm:$0xff] %v398
        %415 = vst [vmem:[%s191 + $0x28] sm:$0xff] %v399
        %416 = vst [vmem:[%s191 + $0x30] sm:$0xff] %v400
        %417 = vst [vmem:[%s191 + $0x38] sm:$0xff] %v401
        %418 = vst [vmem:[%s191 + $0x40] sm:$0xff] %v402
        %419 = vst [vmem:[%s191 + $0x48] sm:$0xff] %v403
        %420 = vst [vmem:[%s191 + $0x50] sm:$0xff] %v404
        %421 = vst [vmem:[%s191 + $0x58] sm:$0xff] %v405
        %422 = vst [vmem:[%s191 + $0x60] sm:$0xff] %v406
        %423 = vst [vmem:[%s191 + $0x68] sm:$0xff] %v407
        %424 = vst [vmem:[%s191 + $0x70] sm:$0xff] %v408
        %425 = vst [vmem:[%s191 + $0x78] sm:$0xff] %v409
        %s426 = sand.u32 %s96, 1
        %s427 = scalar_lea.sflag [#allocation4], %s426
        %s428 = sand.u32 %s96, 1
        %s429 = smul.addr %s428, 128
        %s430 = scalar_lea.vmem [#allocation5], %s429
        // Predicated region
        $region37: #{tpu_custom_call.1} parent=31 // pred_check
          %p431 = pneg %p106
        $region38: #{tpu_custom_call.1} parent=31 // pred_check_branch
          %433 = sbr.rel (%p431) target = $region40
        $region39: #{tpu_custom_call.1} parent=31 // pred_region
          %s434 = smul.u32 4, %s20
          %436 = vsyncadd %s427, 0
          %s437 = smul.addr %s434, 4
          %s438 = smul.addr %s437, 8
          %s439 = scalar_lea.hbm %s3, %s438
          %s440 = sshll.u32 %s430, 4
          %s441 = int_to_ptr.vmem [resolvable:$true] %s440
          %s442 = sshll.u32 %s439, 4
          %s443 = int_to_ptr.hbm [resolvable:$true] %s442
          %448 = dma.vmem_to_hbm [thread:$0]  %s441, 2048, %s443, %s427, 256, 256, 16
        $region40: #{tpu_custom_call.1} parent=31 // pred_fallthru
          _
      $region32: #{tpu_custom_call.1} parent=5 // pred_fallthru
        _
      %p449 = scmp.le.s32.totalorder 2, %s15
      // Predicated region
      $region41: #{tpu_custom_call.1} parent=5 // pred_check
        %p450 = pneg %p449
      $region42: #{tpu_custom_call.1} parent=5 // pred_check_branch
        %452 = sbr.rel (%p450) target = $region44
      $region43: #{tpu_custom_call.1} parent=5 // pred_region
        %s453 = ssub.s32 %s15, 2
        // Predicated region
        $region45: #{tpu_custom_call.1} parent=43 // pred_check
          %p454 = pneg %p112
        $region46: #{tpu_custom_call.1} parent=43 // pred_check_branch
          %456 = sbr.rel (%p454) target = $region48
        $region47: #{tpu_custom_call.1} parent=43 // pred_region
          %s457 = sand.u32 %s97, 1
          %s458 = scalar_lea.sflag [#allocation4], %s457
          %s459 = sand.u32 %s97, 1
          %s460 = smul.addr %s459, 128
          %s461 = scalar_lea.vmem [#allocation5], %s460
          %463 = dma.done %s458, 2048
        $region48: #{tpu_custom_call.1} parent=43 // pred_fallthru
          _
      $region44: #{tpu_custom_call.1} parent=5 // pred_fallthru
        _
    $region6: #{tpu_custom_call.1} parent=1 // loop_footer
      %s19 = sadd.s32 1, %s15
    $region7: #{tpu_custom_call.1} parent=1 // loop_footer_branch
      %14 = sbr.rel target = $region3
    $region8: #{tpu_custom_call.1} parent=1 // loop_exit
      _
    %464 = vsyncpa [#allocation3], 1
    %s465 = scalar_lea.sflag [#allocation3], 1
    %466 = vsyncpa %s465, 1
    %467 = vsyncpa [#allocation4], 1
    %s468 = scalar_lea.sflag [#allocation4], 1
    %469 = vsyncpa %s468, 1

</llo_original>
